<compile_context>
chip_gen: v6e
topology: v6e:2x2x1
jax: 0.10.0
libtpu: 0.0.40
codegen_flags: <defaults>
</compile_context>

<pallas_src>
import functools

import numpy as np
import jax
import jax.numpy as jnp
from jax import lax
from jax.experimental import pallas as pl
from jax.experimental.pallas import tpu as pltpu


# ----------------------------------------------------------------------------
# Pallas kernel
# ----------------------------------------------------------------------------
def _upsampling_kernel(x_ref, off_ref, mask_ref,
                       wst_ref, bst_ref, wt_ref, b2_ref, w3_ref, b3_ref,
                       alpha_ref, out_ref, *, width, cout, W, tHW):
    f32 = jnp.float32
    bf16 = jnp.bfloat16
    Le = x_ref.shape[3]                   # lane-padded tile width (tHW + halo)

    a1 = alpha_ref[0]
    a2 = alpha_ref[1]
    a3 = alpha_ref[2]
    a4 = alpha_ref[3]

    def prelu(v, a):
        return jnp.where(v >= 0, v, a * v)

    x = x_ref[0, 0]                       # (Cin, Le) bf16: row tile + 1-row halo
    off = off_ref[0]                      # (Cout, tHW) int32 quadrant id in {0..3}
    m_rt = mask_ref[0, 0:1, :]            # (1, tHW) right-neighbour-exists mask
    m_dn = mask_ref[0, 1:2, :]            # down-neighbour-exists
    m_dr = mask_ref[0, 2:3, :]            # down-right-neighbour-exists

    # conv1+BN1 (left) and 1x1 conv+BNr (right) fused into ONE stacked bf16 dot
    # (BN scales are folded into the weight rows host-side; only bias remains).
    y = jnp.dot(wst_ref[...], x, preferred_element_type=f32) + bst_ref[...]
    l_act = prelu(y[0:width, :], a1)      # (width, Le), includes halo columns
    r = y[width:, 0:tHW]                  # (Cout, tHW) right branch, no activation

    # Shifted neighbours of l via lane rolls over the halo-extended tile (XLU
    # slot); boundary positions are re-zeroed AFTER the activation (required:
    # prelu(bias) != 0 for zero input) which also kills wrap-around lanes.
    l = l_act[:, 0:tHW]
    l_rt = pltpu.roll(l_act, Le - 1, 1)[:, 0:tHW] * m_rt          # l[i,   j+1]
    l_dn = pltpu.roll(l_act, Le - W, 1)[:, 0:tHW] * m_dn          # l[i+1, j  ]
    l_dr = pltpu.roll(l_act, Le - W - 1, 1)[:, 0:tHW] * m_dr      # l[i+1, j+1]

    # ConvTranspose2d(3, stride=2, pad=1, out_pad=1): the four output parities
    # (0,0),(0,1),(1,0),(1,1) come from ONE block-weight dot on the stacked
    # activations (zero blocks where a tap is absent -> free, MXU pads anyway).
    l4 = jnp.concatenate([l, l_rt, l_dn, l_dr], axis=0).astype(bf16)   # (4w, tHW)
    t = jnp.dot(wt_ref[...], l4, preferred_element_type=f32) + b2_ref[...]
    t = prelu(t, a2)                                                   # (4w, tHW)

    # conv3 (1x1) + BN3 + PReLU on all four parity blocks at once via a
    # block-diagonal weight.  Dropout2d is identity in eval mode.
    left = prelu(jnp.dot(w3_ref[...], t.astype(bf16),
                         preferred_element_type=f32) + b3_ref[...], a3)  # (4*Cout, tHW)

    # MaxUnpool2d(2,2) + residual add + final PReLU, one parity block at a
    # time, stored directly into sublane slices (no full-width concat).
    for q in range(4):
        lq = left[q * cout:(q + 1) * cout, :]
        rq = jnp.where(off == q, r, 0.0)
        out_ref[0, q * cout:(q + 1) * cout, :] = prelu(lq + rq, a4).astype(out_ref.dtype)


# ----------------------------------------------------------------------------
# Wrapper
# ----------------------------------------------------------------------------
def _pick_row_tile(H, W, Cin, Cout, width):
    """Largest H-divisor row tile whose estimated per-step working set fits
    comfortably in VMEM on every generation (v7x: 64 MiB physical / 32 MiB
    default scoped), while preferring >= 2 row tiles per image so the BlockSpec
    pipeline has a next block to double-buffer against."""
    target = 12 * 1024 * 1024

    def est(th):
        tHW = th * W
        Le = tHW + ((W + 127) // 128) * 128
        io = Cin * Le * 2 + Cout * tHW * 4 + 3 * tHW * 4 + 4 * Cout * tHW * 4
        inter = (10 * width + 10 * Cout) * tHW * 4
        return 2 * io + inter            # double-buffered blocks + live intermediates

    cands = [d for d in range(H, 0, -1)
             if H % d == 0 and ((d * W) % 128 == 0 or d == H)]
    pref = [d for d in cands if H // d >= 2] or cands
    for d in pref:
        if est(d) <= target:
            return d
    return pref[-1]


def upsampling_block_forward(x, indices, params):
    """x: (N, Cin, H, W) f32 NCHW; indices: (N, Cout, H, W) int32 flat indices
    over the (2H, 2W) plane from MaxPool2d(2,2).  Returns (N, Cout, 2H, 2W) f32."""
    N, Cin, H, W = x.shape
    Cout = params["cout"]
    width = params["width"]
    HW = H * W

    th = _pick_row_tile(H, W, Cin, Cout, width)
    n_tiles = H // th
    tHW = th * W
    Le = tHW + ((W + 127) // 128) * 128      # room for the 1-row halo, lane-padded

    # --- host-side input prep (this pass doubles as the bf16 cast of x) -----
    # Each row tile carries its own 1-row "down" halo appended on the lane axis
    # so the in-kernel down / down-right shifts are plain lane rolls.
    rows = np.minimum(
        np.arange(n_tiles)[:, None] * th + np.arange(th + 1)[None, :], H - 1)
    x_t = x[:, :, rows, :]                                  # (N, Cin, nt, th+1, W)
    x_t = x_t.reshape(N, Cin, n_tiles, (th + 1) * W)
    x_ext = jnp.pad(x_t, ((0, 0), (0, 0), (0, 0), (0, Le - (th + 1) * W)))
    x_ext = jnp.transpose(x_ext, (0, 2, 1, 3)).astype(jnp.bfloat16)  # (N,nt,Cin,Le)

    # MaxUnpool quadrant id (0..3), precomputed host-side (no in-kernel // %).
    ii = jnp.arange(H)[:, None]
    jj = jnp.arange(W)[None, :]
    base = ((2 * ii) * (2 * W) + 2 * jj).astype(jnp.int32)
    offr = indices.astype(jnp.int32) - base[None, None]
    quad = ((offr // (2 * W)) * 2 + (offr % (2 * W))).reshape(N, Cout, HW)

    # Boundary masks per row tile (right / down / down-right neighbour exists).
    col = np.arange(tHW) % W
    lrow = np.arange(tHW) // W
    m_rt = (col < W - 1).astype(np.float32)
    masks = np.ones((n_tiles, 3, tHW), np.float32)
    masks[:, 0] = m_rt
    masks[-1, 1] = (lrow < th - 1).astype(np.float32)       # image bottom row
    masks[:, 2] = masks[:, 1] * m_rt
    masks = jnp.asarray(masks)

    inputs = (x_ext, quad, masks,
              params["wst"], params["bst"], params["wt"], params["b2"],
              params["w3b"], params["b3"], params["alphas"])

    def _full(shape):
        nd = len(shape)
        return pl.BlockSpec(shape, lambda n, r, _nd=nd: (0,) * _nd)

    in_specs = [
        pl.BlockSpec((1, 1, Cin, Le), lambda n, r: (n, r, 0, 0)),   # x tile+halo
        pl.BlockSpec((1, Cout, tHW), lambda n, r: (n, 0, r)),       # unpool quad
        pl.BlockSpec((1, 3, tHW), lambda n, r: (r, 0, 0)),          # masks
        _full(params["wst"].shape), _full(params["bst"].shape),
        _full(params["wt"].shape), _full(params["b2"].shape),
        _full(params["w3b"].shape), _full(params["b3"].shape),
        pl.BlockSpec(memory_space=pltpu.MemorySpace.SMEM),          # PReLU alphas
    ]

    flops = 2 * N * HW * ((width + Cout) * Cin
                          + (4 * width) * (4 * width)
                          + (4 * Cout) * (4 * width))
    bytes_accessed = (x_ext.size * 2 + quad.size * 4 + masks.size * 4
                      + N * 4 * Cout * HW * 4
                      + sum(int(np.prod(params[k].shape)) * 2
                            for k in ("wst", "wt", "w3b")))
    cost = pl.CostEstimate(flops=int(flops), transcendentals=0,
                           bytes_accessed=int(bytes_accessed))

    out = pl.pallas_call(
        functools.partial(_upsampling_kernel, width=width, cout=Cout,
                          W=W, tHW=tHW),
        out_shape=jax.ShapeDtypeStruct((N, 4 * Cout, HW), jnp.float32),
        grid=(N, n_tiles),
        in_specs=in_specs,
        out_specs=pl.BlockSpec((1, 4 * Cout, tHW), lambda n, r: (n, 0, r)),
        compiler_params=pltpu.CompilerParams(
            dimension_semantics=("parallel", "parallel"),
            vmem_limit_bytes=48 * 1024 * 1024),
        cost_estimate=cost,
    )(*inputs)

    # Pixel-shuffle of the parity-quadrant layout back to NCHW.  A downstream
    # consumer could read the (N, 4*Cout, H*W) quadrant layout (or bf16) and
    # skip this extra HBM pass entirely.
    out = out.reshape(N, 2, 2, Cout, H, W).transpose(0, 3, 4, 1, 5, 2)
    return out.reshape(N, Cout, 2 * H, 2 * W)


# ----------------------------------------------------------------------------
# Deterministic parameter init (PyTorch layouts), BN folding, pure-JAX reference
# ----------------------------------------------------------------------------
def init_params(key, in_channels, out_channels, projection_ratio=4):
    width = in_channels // projection_ratio
    keys = iter(jax.random.split(key, 32))

    def nrm(shape):
        fan_in = int(np.prod(shape[1:]))
        return jax.random.normal(next(keys), shape, jnp.float32) / np.sqrt(fan_in)

    def bn(c):
        gamma = 1.0 + 0.1 * jax.random.normal(next(keys), (c,), jnp.float32)
        beta = 0.1 * jax.random.normal(next(keys), (c,), jnp.float32)
        mean = 0.1 * jax.random.normal(next(keys), (c,), jnp.float32)
        var = jax.random.uniform(next(keys), (c,), jnp.float32, 0.5, 1.5)
        return (gamma, beta, mean, var)

    return {
        "conv1_w": nrm((width, in_channels, 1, 1)),        # Conv2d: (out, in, 1, 1)
        "bn1": bn(width),
        "convt_w": nrm((width, width, 3, 3)),              # ConvTranspose2d: (in, out, 3, 3)
        "bn2": bn(width),
        "conv3_w": nrm((out_channels, width, 1, 1)),
        "bn3": bn(out_channels),
        "convr_w": nrm((out_channels, in_channels, 1, 1)),
        "bnr": bn(out_channels),
        "alphas": jax.random.uniform(next(keys), (4,), jnp.float32, 0.05, 0.45),
    }


def fold_params(raw):
    """Fold BN scales into weights, stack/block the weights for the kernel,
    and pre-cast matmul operands to bf16 (biases stay f32)."""
    eps = 1e-5
    f32 = jnp.float32
    bf16 = jnp.bfloat16

    def sb(bnp):
        gamma, beta, mean, var = bnp
        s = gamma / jnp.sqrt(var + eps)
        return s, beta - mean * s

    s1, b1 = sb(raw["bn1"])
    s2, b2 = sb(raw["bn2"])
    s3, b3 = sb(raw["bn3"])
    sr, br = sb(raw["bnr"])

    # conv1 / right-branch conv: fold BN scale into rows and stack so the
    # kernel issues ONE dot against x per tile.
    w1 = raw["conv1_w"][:, :, 0, 0] * s1[:, None]          # (width, Cin)
    wr = raw["convr_w"][:, :, 0, 0] * sr[:, None]          # (Cout, Cin)
    wst = jnp.concatenate([w1, wr], axis=0).astype(bf16)
    bst = jnp.concatenate([b1, br], axis=0)[:, None].astype(f32)

    # ConvTranspose2d taps as a single block weight acting on [l,l_rt,l_dn,l_dr];
    # row blocks are the output parities (0,0),(0,1),(1,0),(1,1); BN2 folded.
    ct = raw["convt_w"]                                    # (in, out, 3, 3)
    width = ct.shape[0]
    Z = jnp.zeros((width, width), f32)

    def tap(ky, kx):                                       # (out, in) per tap
        return jnp.transpose(ct[:, :, ky, kx])

    A = jnp.concatenate([
        jnp.concatenate([tap(1, 1), Z,         Z,         Z        ], axis=1),
        jnp.concatenate([tap(1, 2), tap(1, 0), Z,         Z        ], axis=1),
        jnp.concatenate([tap(2, 1), Z,         tap(0, 1), Z        ], axis=1),
        jnp.concatenate([tap(2, 2), tap(2, 0), tap(0, 2), tap(0, 0)], axis=1),
    ], axis=0)                                             # (4w, 4w)
    wt = (A * jnp.tile(s2, 4)[:, None]).astype(bf16)
    b2t = jnp.tile(b2, 4)[:, None].astype(f32)

    # conv3 applied to all four parity blocks at once: block-diagonal, BN3 folded.
    w3 = raw["conv3_w"][:, :, 0, 0] * s3[:, None]          # (Cout, width)
    cout = w3.shape[0]
    Zc = jnp.zeros((cout, width), f32)
    w3b = jnp.concatenate([
        jnp.concatenate([w3, Zc, Zc, Zc], axis=1),
        jnp.concatenate([Zc, w3, Zc, Zc], axis=1),
        jnp.concatenate([Zc, Zc, w3, Zc], axis=1),
        jnp.concatenate([Zc, Zc, Zc, w3], axis=1),
    ], axis=0).astype(bf16)                                # (4*Cout, 4w)
    b3t = jnp.tile(b3, 4)[:, None].astype(f32)

    return dict(wst=wst, bst=bst, wt=wt, b2=b2t, w3b=w3b, b3=b3t,
                alphas=raw["alphas"], width=int(width), cout=int(cout))


def reference_forward(x, indices, raw):
    """Pure-JAX reference (eval-mode semantics), NHWC, f32 HIGHEST precision."""
    eps = 1e-5
    hi = lax.Precision.HIGHEST

    def prelu(v, a):
        return jnp.where(v >= 0, v, a * v)

    def bn_apply(v, bnp):
        gamma, beta, mean, var = bnp
        return (v - mean) / jnp.sqrt(var + eps) * gamma + beta

    a1, a2, a3, a4 = raw["alphas"]

    w1 = raw["conv1_w"][:, :, 0, 0]
    l = prelu(bn_apply(jnp.einsum("nhwc,dc->nhwd", x, w1, precision=hi), raw["bn1"]), a1)

    wt = raw["convt_w"]
    w_hwio = jnp.transpose(wt[:, :, ::-1, ::-1], (2, 3, 0, 1))
    t = lax.conv_general_dilated(l, w_hwio, window_strides=(1, 1),
                                 padding=((1, 2), (1, 2)), lhs_dilation=(2, 2),
                                 dimension_numbers=("NHWC", "HWIO", "NHWC"),
                                 precision=hi)
    t = prelu(bn_apply(t, raw["bn2"]), a2)

    w3 = raw["conv3_w"][:, :, 0, 0]
    left = prelu(bn_apply(jnp.einsum("nhwc,dc->nhwd", t, w3, precision=hi), raw["bn3"]), a3)

    wr = raw["convr_w"][:, :, 0, 0]
    r = bn_apply(jnp.einsum("nhwc,dc->nhwd", x, wr, precision=hi), raw["bnr"])

    N, H, W, C = r.shape
    HO, WO = 2 * H, 2 * W
    r_ncf = jnp.transpose(r, (0, 3, 1, 2)).reshape(N, C, H * W)
    idx_ncf = jnp.transpose(indices, (0, 3, 1, 2)).reshape(N, C, H * W)
    n_i = jnp.arange(N)[:, None, None]
    c_i = jnp.arange(C)[None, :, None]
    up = jnp.zeros((N, C, HO * WO), r.dtype).at[n_i, c_i, idx_ncf].set(r_ncf)
    right = jnp.transpose(up.reshape(N, C, HO, WO), (0, 2, 3, 1))
    return prelu(left + right, a4)


# ----------------------------------------------------------------------------
if __name__ == "__main__":
    key = jax.random.PRNGKey(0)
    N, H, W = 2, 16, 16
    in_channels, out_channels = 32, 16

    k_x, k_idx, k_p = jax.random.split(key, 3)
    x = jax.random.normal(k_x, (N, in_channels, H, W), jnp.float32)     # NCHW

    # MaxPool2d(2,2)-style indices: each (n, c, i, j) picks one cell in its
    # 2x2 window of the (2H, 2W) plane, encoded as flat index oy*(2W)+ox.
    dy = jax.random.randint(jax.random.fold_in(k_idx, 0),
                            (N, out_channels, H, W), 0, 2)
    dx = jax.random.randint(jax.random.fold_in(k_idx, 1),
                            (N, out_channels, H, W), 0, 2)
    ii = jnp.arange(H)[None, None, :, None]
    jj = jnp.arange(W)[None, None, None, :]
    indices = ((2 * ii + dy) * (2 * W) + (2 * jj + dx)).astype(jnp.int32)

    raw = init_params(k_p, in_channels, out_channels)
    params = fold_params(raw)

    out = jax.block_until_ready(upsampling_block_forward(x, indices, params))

    x_nhwc = jnp.transpose(x, (0, 2, 3, 1))
    idx_nhwc = jnp.transpose(indices, (0, 2, 3, 1))
    ref = jnp.transpose(reference_forward(x_nhwc, idx_nhwc, raw), (0, 3, 1, 2))
    ref = jax.block_until_ready(ref)

    assert out.shape == (N, out_channels, 2 * H, 2 * W), out.shape
    # Kernel uses bf16 MXU operands (f32 accumulate/epilogue) across three
    # chained matmul stages -> tolerance sized accordingly vs. the f32 HIGHEST
    # precision reference.
    np.testing.assert_allclose(np.asarray(out), np.asarray(ref), rtol=3e-2, atol=3e-2)
    print("KERNEL_OK")
</pallas_src>

<mosaic_0001>
module attributes {stable_mosaic.version = 11 : i64} {
  func.func @_upsampling_kernel(%arg0: i32, %arg1: i32, %arg2: memref<1x1x32x256xbf16, #tpu.memory_space<vmem>>, %arg3: memref<1x16x128xi32, #tpu.memory_space<vmem>>, %arg4: memref<1x3x128xf32, #tpu.memory_space<vmem>>, %arg5: memref<24x32xbf16, #tpu.memory_space<vmem>>, %arg6: memref<24x1xf32, #tpu.memory_space<vmem>>, %arg7: memref<32x32xbf16, #tpu.memory_space<vmem>>, %arg8: memref<32x1xf32, #tpu.memory_space<vmem>>, %arg9: memref<64x32xbf16, #tpu.memory_space<vmem>>, %arg10: memref<64x1xf32, #tpu.memory_space<vmem>>, %arg11: memref<4xf32, #tpu.memory_space<smem>>, %arg12: memref<1x64x128xf32, #tpu.memory_space<vmem>>) attributes {dimension_semantics = [#tpu.dimension_semantics<parallel>, #tpu.dimension_semantics<parallel>], iteration_bounds = array<i64: 2, 2>, scalar_prefetch = 0 : i64, scratch_operands = 0 : i64, tpu.core_type = #tpu.core_type<tc>, window_params = [{transform_indices = @transform_0, window_bounds = array<i64: 1, 1, 32, 256>}, {transform_indices = @transform_1, window_bounds = array<i64: 1, 16, 128>}, {transform_indices = @transform_2, window_bounds = array<i64: 1, 3, 128>}, {pipeline_mode = #tpu.pipeline_mode<synchronous>, transform_indices = @transform_3, window_bounds = array<i64: 24, 32>}, {pipeline_mode = #tpu.pipeline_mode<synchronous>, transform_indices = @transform_4, window_bounds = array<i64: 24, 1>}, {pipeline_mode = #tpu.pipeline_mode<synchronous>, transform_indices = @transform_5, window_bounds = array<i64: 32, 32>}, {pipeline_mode = #tpu.pipeline_mode<synchronous>, transform_indices = @transform_6, window_bounds = array<i64: 32, 1>}, {pipeline_mode = #tpu.pipeline_mode<synchronous>, transform_indices = @transform_7, window_bounds = array<i64: 64, 32>}, {pipeline_mode = #tpu.pipeline_mode<synchronous>, transform_indices = @transform_8, window_bounds = array<i64: 64, 1>}, {transform_indices = @transform_9, window_bounds = array<i64: 4>}, {transform_indices = @transform_10, window_bounds = array<i64: 1, 64, 128>}]} {
    %c0 = arith.constant 0 : index
    %0 = memref.load %arg11[%c0] : memref<4xf32, #tpu.memory_space<smem>>
    %c1 = arith.constant 1 : index
    %1 = memref.load %arg11[%c1] : memref<4xf32, #tpu.memory_space<smem>>
    %c2 = arith.constant 2 : index
    %2 = memref.load %arg11[%c2] : memref<4xf32, #tpu.memory_space<smem>>
    %c3 = arith.constant 3 : index
    %3 = memref.load %arg11[%c3] : memref<4xf32, #tpu.memory_space<smem>>
    %c0_0 = arith.constant 0 : index
    %c0_1 = arith.constant 0 : index
    %c0_2 = arith.constant 0 : index
    %c0_3 = arith.constant 0 : index
    %4 = vector.load %arg2[%c0_0, %c0_1, %c0_2, %c0_3] : memref<1x1x32x256xbf16, #tpu.memory_space<vmem>>, vector<1x1x32x256xbf16>
    %5 = vector.shape_cast %4 : vector<1x1x32x256xbf16> to vector<32x256xbf16>
    %c0_4 = arith.constant 0 : index
    %c0_5 = arith.constant 0 : index
    %c0_6 = arith.constant 0 : index
    %6 = vector.load %arg3[%c0_4, %c0_5, %c0_6] : memref<1x16x128xi32, #tpu.memory_space<vmem>>, vector<1x16x128xi32>
    %7 = vector.shape_cast %6 : vector<1x16x128xi32> to vector<16x128xi32>
    %c0_7 = arith.constant 0 : index
    %c0_8 = arith.constant 0 : index
    %c0_9 = arith.constant 0 : index
    %8 = vector.load %arg4[%c0_7, %c0_8, %c0_9] : memref<1x3x128xf32, #tpu.memory_space<vmem>>, vector<1x1x128xf32>
    %9 = vector.shape_cast %8 : vector<1x1x128xf32> to vector<1x128xf32>
    %c0_10 = arith.constant 0 : index
    %c1_11 = arith.constant 1 : index
    %c0_12 = arith.constant 0 : index
    %10 = vector.load %arg4[%c0_10, %c1_11, %c0_12] : memref<1x3x128xf32, #tpu.memory_space<vmem>>, vector<1x1x128xf32>
    %11 = vector.shape_cast %10 : vector<1x1x128xf32> to vector<1x128xf32>
    %c0_13 = arith.constant 0 : index
    %c2_14 = arith.constant 2 : index
    %c0_15 = arith.constant 0 : index
    %12 = vector.load %arg4[%c0_13, %c2_14, %c0_15] : memref<1x3x128xf32, #tpu.memory_space<vmem>>, vector<1x1x128xf32>
    %13 = vector.shape_cast %12 : vector<1x1x128xf32> to vector<1x128xf32>
    %c0_16 = arith.constant 0 : index
    %c0_17 = arith.constant 0 : index
    %14 = vector.load %arg5[%c0_16, %c0_17] : memref<24x32xbf16, #tpu.memory_space<vmem>>, vector<24x32xbf16>
    %cst = arith.constant dense<0.000000e+00> : vector<24x256xf32>
    %15 = tpu.matmul %14, %5, %cst {dimension_numbers = #tpu.dot_dimension_numbers<[1], [0], [0], [1], [0, 0, 1, 1], [], []>} : vector<24x32xbf16>, vector<32x256xbf16>, vector<24x256xf32> -> vector<24x256xf32>
    %c0_18 = arith.constant 0 : index
    %c0_19 = arith.constant 0 : index
    %16 = vector.load %arg6[%c0_18, %c0_19] : memref<24x1xf32, #tpu.memory_space<vmem>>, vector<24x1xf32>
    %17 = vector.broadcast %16 : vector<24x1xf32> to vector<24x256xf32>
    %18 = arith.addf %15, %17 : vector<24x256xf32>
    %19 = vector.extract_strided_slice %18 {offsets = [0, 0], sizes = [8, 256], strides = [1, 1]} : vector<24x256xf32> to vector<8x256xf32>
    %cst_20 = arith.constant 0.000000e+00 : f32
    %20 = vector.broadcast %cst_20 : f32 to vector<8x256xf32>
    %21 = arith.cmpf oge, %19, %20 : vector<8x256xf32>
    %22 = vector.broadcast %0 : f32 to vector<8x256xf32>
    %23 = arith.mulf %22, %19 : vector<8x256xf32>
    %24 = arith.select %21, %19, %23 : vector<8x256xi1>, vector<8x256xf32>
    %25 = vector.extract_strided_slice %18 {offsets = [8, 0], sizes = [16, 128], strides = [1, 1]} : vector<24x256xf32> to vector<16x128xf32>
    %26 = vector.extract_strided_slice %24 {offsets = [0, 0], sizes = [8, 128], strides = [1, 1]} : vector<8x256xf32> to vector<8x128xf32>
    %c255_i32 = arith.constant 255 : i32
    %27 = tpu.dynamic_rotate %24 by %c255_i32 dim 1 : vector<8x256xf32>, i32 -> vector<8x256xf32>
    %28 = vector.extract_strided_slice %27 {offsets = [0, 0], sizes = [8, 128], strides = [1, 1]} : vector<8x256xf32> to vector<8x128xf32>
    %29 = vector.broadcast %9 : vector<1x128xf32> to vector<8x128xf32>
    %30 = arith.mulf %28, %29 : vector<8x128xf32>
    %c240_i32 = arith.constant 240 : i32
    %31 = tpu.dynamic_rotate %24 by %c240_i32 dim 1 : vector<8x256xf32>, i32 -> vector<8x256xf32>
    %32 = vector.extract_strided_slice %31 {offsets = [0, 0], sizes = [8, 128], strides = [1, 1]} : vector<8x256xf32> to vector<8x128xf32>
    %33 = vector.broadcast %11 : vector<1x128xf32> to vector<8x128xf32>
    %34 = arith.mulf %32, %33 : vector<8x128xf32>
    %c239_i32 = arith.constant 239 : i32
    %35 = tpu.dynamic_rotate %24 by %c239_i32 dim 1 : vector<8x256xf32>, i32 -> vector<8x256xf32>
    %36 = vector.extract_strided_slice %35 {offsets = [0, 0], sizes = [8, 128], strides = [1, 1]} : vector<8x256xf32> to vector<8x128xf32>
    %37 = vector.broadcast %13 : vector<1x128xf32> to vector<8x128xf32>
    %38 = arith.mulf %36, %37 : vector<8x128xf32>
    %39 = tpu.concatenate %26, %30, %34, %38 in 0 : vector<8x128xf32>, vector<8x128xf32>, vector<8x128xf32>, vector<8x128xf32> -> vector<32x128xf32>
    %40 = arith.truncf %39 : vector<32x128xf32> to vector<32x128xbf16>
    %c0_21 = arith.constant 0 : index
    %c0_22 = arith.constant 0 : index
    %41 = vector.load %arg7[%c0_21, %c0_22] : memref<32x32xbf16, #tpu.memory_space<vmem>>, vector<32x32xbf16>
    %cst_23 = arith.constant dense<0.000000e+00> : vector<32x128xf32>
    %42 = tpu.matmul %41, %40, %cst_23 {dimension_numbers = #tpu.dot_dimension_numbers<[1], [0], [0], [1], [0, 0, 1, 1], [], []>} : vector<32x32xbf16>, vector<32x128xbf16>, vector<32x128xf32> -> vector<32x128xf32>
    %c0_24 = arith.constant 0 : index
    %c0_25 = arith.constant 0 : index
    %43 = vector.load %arg8[%c0_24, %c0_25] : memref<32x1xf32, #tpu.memory_space<vmem>>, vector<32x1xf32>
    %44 = vector.broadcast %43 : vector<32x1xf32> to vector<32x128xf32>
    %45 = arith.addf %42, %44 : vector<32x128xf32>
    %cst_26 = arith.constant 0.000000e+00 : f32
    %46 = vector.broadcast %cst_26 : f32 to vector<32x128xf32>
    %47 = arith.cmpf oge, %45, %46 : vector<32x128xf32>
    %48 = vector.broadcast %1 : f32 to vector<32x128xf32>
    %49 = arith.mulf %48, %45 : vector<32x128xf32>
    %50 = arith.select %47, %45, %49 : vector<32x128xi1>, vector<32x128xf32>
    %c0_27 = arith.constant 0 : index
    %c0_28 = arith.constant 0 : index
    %51 = vector.load %arg9[%c0_27, %c0_28] : memref<64x32xbf16, #tpu.memory_space<vmem>>, vector<64x32xbf16>
    %52 = arith.truncf %50 : vector<32x128xf32> to vector<32x128xbf16>
    %cst_29 = arith.constant dense<0.000000e+00> : vector<64x128xf32>
    %53 = tpu.matmul %51, %52, %cst_29 {dimension_numbers = #tpu.dot_dimension_numbers<[1], [0], [0], [1], [0, 0, 1, 1], [], []>} : vector<64x32xbf16>, vector<32x128xbf16>, vector<64x128xf32> -> vector<64x128xf32>
    %c0_30 = arith.constant 0 : index
    %c0_31 = arith.constant 0 : index
    %54 = vector.load %arg10[%c0_30, %c0_31] : memref<64x1xf32, #tpu.memory_space<vmem>>, vector<64x1xf32>
    %55 = vector.broadcast %54 : vector<64x1xf32> to vector<64x128xf32>
    %56 = arith.addf %53, %55 : vector<64x128xf32>
    %cst_32 = arith.constant 0.000000e+00 : f32
    %57 = vector.broadcast %cst_32 : f32 to vector<64x128xf32>
    %58 = arith.cmpf oge, %56, %57 : vector<64x128xf32>
    %59 = vector.broadcast %2 : f32 to vector<64x128xf32>
    %60 = arith.mulf %59, %56 : vector<64x128xf32>
    %61 = arith.select %58, %56, %60 : vector<64x128xi1>, vector<64x128xf32>
    %62 = vector.extract_strided_slice %61 {offsets = [0, 0], sizes = [16, 128], strides = [1, 1]} : vector<64x128xf32> to vector<16x128xf32>
    %c0_i32 = arith.constant 0 : i32
    %63 = vector.broadcast %c0_i32 : i32 to vector<16x128xi32>
    %64 = arith.cmpi eq, %7, %63 : vector<16x128xi32>
    %cst_33 = arith.constant 0.000000e+00 : f32
    %65 = vector.broadcast %cst_33 : f32 to vector<16x128xf32>
    %66 = arith.select %64, %25, %65 : vector<16x128xi1>, vector<16x128xf32>
    %67 = arith.addf %62, %66 : vector<16x128xf32>
    %cst_34 = arith.constant 0.000000e+00 : f32
    %68 = vector.broadcast %cst_34 : f32 to vector<16x128xf32>
    %69 = arith.cmpf oge, %67, %68 : vector<16x128xf32>
    %70 = vector.broadcast %3 : f32 to vector<16x128xf32>
    %71 = arith.mulf %70, %67 : vector<16x128xf32>
    %72 = arith.select %69, %67, %71 : vector<16x128xi1>, vector<16x128xf32>
    %c0_35 = arith.constant 0 : index
    %c0_36 = arith.constant 0 : index
    %c0_37 = arith.constant 0 : index
    %73 = vector.load %arg12[%c0_35, %c0_36, %c0_37] : memref<1x64x128xf32, #tpu.memory_space<vmem>>, vector<1x16x128xf32>
    %74 = vector.shape_cast %73 : vector<1x16x128xf32> to vector<16x128xf32>
    %75 = vector.shape_cast %72 : vector<16x128xf32> to vector<1x16x128xf32>
    tpu.vector_store %arg12[%c0_35, %c0_36, %c0_37], %75 {strides = array<i32>} : memref<1x64x128xf32, #tpu.memory_space<vmem>>, vector<1x16x128xf32>,
    %76 = vector.extract_strided_slice %61 {offsets = [16, 0], sizes = [16, 128], strides = [1, 1]} : vector<64x128xf32> to vector<16x128xf32>
    %c1_i32 = arith.constant 1 : i32
    %77 = vector.broadcast %c1_i32 : i32 to vector<16x128xi32>
    %78 = arith.cmpi eq, %7, %77 : vector<16x128xi32>
    %cst_38 = arith.constant 0.000000e+00 : f32
    %79 = vector.broadcast %cst_38 : f32 to vector<16x128xf32>
    %80 = arith.select %78, %25, %79 : vector<16x128xi1>, vector<16x128xf32>
    %81 = arith.addf %76, %80 : vector<16x128xf32>
    %cst_39 = arith.constant 0.000000e+00 : f32
    %82 = vector.broadcast %cst_39 : f32 to vector<16x128xf32>
    %83 = arith.cmpf oge, %81, %82 : vector<16x128xf32>
    %84 = vector.broadcast %3 : f32 to vector<16x128xf32>
    %85 = arith.mulf %84, %81 : vector<16x128xf32>
    %86 = arith.select %83, %81, %85 : vector<16x128xi1>, vector<16x128xf32>
    %c0_40 = arith.constant 0 : index
    %c16 = arith.constant 16 : index
    %c0_41 = arith.constant 0 : index
    %87 = vector.load %arg12[%c0_40, %c16, %c0_41] : memref<1x64x128xf32, #tpu.memory_space<vmem>>, vector<1x16x128xf32>
    %88 = vector.shape_cast %87 : vector<1x16x128xf32> to vector<16x128xf32>
    %89 = vector.shape_cast %86 : vector<16x128xf32> to vector<1x16x128xf32>
    tpu.vector_store %arg12[%c0_40, %c16, %c0_41], %89 {strides = array<i32>} : memref<1x64x128xf32, #tpu.memory_space<vmem>>, vector<1x16x128xf32>,
    %90 = vector.extract_strided_slice %61 {offsets = [32, 0], sizes = [16, 128], strides = [1, 1]} : vector<64x128xf32> to vector<16x128xf32>
    %c2_i32 = arith.constant 2 : i32
    %91 = vector.broadcast %c2_i32 : i32 to vector<16x128xi32>
    %92 = arith.cmpi eq, %7, %91 : vector<16x128xi32>
    %cst_42 = arith.constant 0.000000e+00 : f32
    %93 = vector.broadcast %cst_42 : f32 to vector<16x128xf32>
    %94 = arith.select %92, %25, %93 : vector<16x128xi1>, vector<16x128xf32>
    %95 = arith.addf %90, %94 : vector<16x128xf32>
    %cst_43 = arith.constant 0.000000e+00 : f32
    %96 = vector.broadcast %cst_43 : f32 to vector<16x128xf32>
    %97 = arith.cmpf oge, %95, %96 : vector<16x128xf32>
    %98 = vector.broadcast %3 : f32 to vector<16x128xf32>
    %99 = arith.mulf %98, %95 : vector<16x128xf32>
    %100 = arith.select %97, %95, %99 : vector<16x128xi1>, vector<16x128xf32>
    %c0_44 = arith.constant 0 : index
    %c32 = arith.constant 32 : index
    %c0_45 = arith.constant 0 : index
    %101 = vector.load %arg12[%c0_44, %c32, %c0_45] : memref<1x64x128xf32, #tpu.memory_space<vmem>>, vector<1x16x128xf32>
    %102 = vector.shape_cast %101 : vector<1x16x128xf32> to vector<16x128xf32>
    %103 = vector.shape_cast %100 : vector<16x128xf32> to vector<1x16x128xf32>
    tpu.vector_store %arg12[%c0_44, %c32, %c0_45], %103 {strides = array<i32>} : memref<1x64x128xf32, #tpu.memory_space<vmem>>, vector<1x16x128xf32>,
    %104 = vector.extract_strided_slice %61 {offsets = [48, 0], sizes = [16, 128], strides = [1, 1]} : vector<64x128xf32> to vector<16x128xf32>
    %c3_i32 = arith.constant 3 : i32
    %105 = vector.broadcast %c3_i32 : i32 to vector<16x128xi32>
    %106 = arith.cmpi eq, %7, %105 : vector<16x128xi32>
    %cst_46 = arith.constant 0.000000e+00 : f32
    %107 = vector.broadcast %cst_46 : f32 to vector<16x128xf32>
    %108 = arith.select %106, %25, %107 : vector<16x128xi1>, vector<16x128xf32>
    %109 = arith.addf %104, %108 : vector<16x128xf32>
    %cst_47 = arith.constant 0.000000e+00 : f32
    %110 = vector.broadcast %cst_47 : f32 to vector<16x128xf32>
    %111 = arith.cmpf oge, %109, %110 : vector<16x128xf32>
    %112 = vector.broadcast %3 : f32 to vector<16x128xf32>
    %113 = arith.mulf %112, %109 : vector<16x128xf32>
    %114 = arith.select %111, %109, %113 : vector<16x128xi1>, vector<16x128xf32>
    %c0_48 = arith.constant 0 : index
    %c48 = arith.constant 48 : index
    %c0_49 = arith.constant 0 : index
    %115 = vector.load %arg12[%c0_48, %c48, %c0_49] : memref<1x64x128xf32, #tpu.memory_space<vmem>>, vector<1x16x128xf32>
    %116 = vector.shape_cast %115 : vector<1x16x128xf32> to vector<16x128xf32>
    %117 = vector.shape_cast %114 : vector<16x128xf32> to vector<1x16x128xf32>
    tpu.vector_store %arg12[%c0_48, %c48, %c0_49], %117 {strides = array<i32>} : memref<1x64x128xf32, #tpu.memory_space<vmem>>, vector<1x16x128xf32>,
    return
  }
  func.func @transform_0(%arg0: i32, %arg1: i32) -> (i32, i32, i32, i32) {
    %c0_i32 = arith.constant 0 : i32
    %c0_i32_0 = arith.constant 0 : i32
    %c0_i32_1 = arith.constant 0 : i32
    return %arg0, %arg1, %c0_i32, %c0_i32_0 : i32, i32, i32, i32
  }
  func.func @transform_1(%arg0: i32, %arg1: i32) -> (i32, i32, i32) {
    %c0_i32 = arith.constant 0 : i32
    %c0_i32_0 = arith.constant 0 : i32
    return %arg0, %c0_i32, %arg1 : i32, i32, i32
  }
  func.func @transform_2(%arg0: i32, %arg1: i32) -> (i32, i32, i32) {
    %c0_i32 = arith.constant 0 : i32
    %c0_i32_0 = arith.constant 0 : i32
    %c0_i32_1 = arith.constant 0 : i32
    return %arg1, %c0_i32, %c0_i32_0 : i32, i32, i32
  }
  func.func @transform_3(%arg0: i32, %arg1: i32) -> (i32, i32) {
    %c0_i32 = arith.constant 0 : i32
    %c0_i32_0 = arith.constant 0 : i32
    %c0_i32_1 = arith.constant 0 : i32
    return %c0_i32, %c0_i32_0 : i32, i32
  }
  func.func @transform_4(%arg0: i32, %arg1: i32) -> (i32, i32) {
    %c0_i32 = arith.constant 0 : i32
    %c0_i32_0 = arith.constant 0 : i32
    %c0_i32_1 = arith.constant 0 : i32
    return %c0_i32, %c0_i32_0 : i32, i32
  }
  func.func @transform_5(%arg0: i32, %arg1: i32) -> (i32, i32) {
    %c0_i32 = arith.constant 0 : i32
    %c0_i32_0 = arith.constant 0 : i32
    %c0_i32_1 = arith.constant 0 : i32
    return %c0_i32, %c0_i32_0 : i32, i32
  }
  func.func @transform_6(%arg0: i32, %arg1: i32) -> (i32, i32) {
    %c0_i32 = arith.constant 0 : i32
    %c0_i32_0 = arith.constant 0 : i32
    %c0_i32_1 = arith.constant 0 : i32
    return %c0_i32, %c0_i32_0 : i32, i32
  }
  func.func @transform_7(%arg0: i32, %arg1: i32) -> (i32, i32) {
    %c0_i32 = arith.constant 0 : i32
    %c0_i32_0 = arith.constant 0 : i32
    %c0_i32_1 = arith.constant 0 : i32
    return %c0_i32, %c0_i32_0 : i32, i32
  }
  func.func @transform_8(%arg0: i32, %arg1: i32) -> (i32, i32) {
    %c0_i32 = arith.constant 0 : i32
    %c0_i32_0 = arith.constant 0 : i32
    %c0_i32_1 = arith.constant 0 : i32
    return %c0_i32, %c0_i32_0 : i32, i32
  }
  func.func @transform_9(%arg0: i32, %arg1: i32) -> i32 {
    %c0_i32 = arith.constant 0 : i32
    %c0_i32_0 = arith.constant 0 : i32
    return %c0_i32 : i32
  }
  func.func @transform_10(%arg0: i32, %arg1: i32) -> (i32, i32, i32) {
    %c0_i32 = arith.constant 0 : i32
    %c0_i32_0 = arith.constant 0 : i32
    return %arg0, %c0_i32, %arg1 : i32, i32, i32
  }
}

</mosaic_0001>

<llo_original>
// kernel: tpu_custom_call.1
$region0: #{tpu_custom_call.1}
  #allocation0 [shape = 'u32[]', space=smem, size = 0x4, offset = 0x4, fixed_abs, tag = 'smem constant byte address 0x4 - core index']
  #allocation1 [shape = 'u32[144,128]{1,0:T(1,128)}', space=vmem, size = 0x12000, scoped, tag = 'internal scratch']
  %s0 = inlined_call_operand.vmem [shape: bf16[2,2,32,256], index: 0, kind: input, shape index: {}]
  %s1 = inlined_call_operand.hbm [shape: s32[2,16,256], index: 1, kind: input, shape index: {}]
  %s2 = inlined_call_operand.vmem [shape: f32[2,3,128], index: 2, kind: input, shape index: {}]
  %s3 = inlined_call_operand.vmem [shape: bf16[24,32], index: 3, kind: input, shape index: {}]
  %s4 = inlined_call_operand.vmem [shape: f32[24,1], index: 4, kind: input, shape index: {}]
  %s5 = inlined_call_operand.vmem [shape: bf16[32,32], index: 5, kind: input, shape index: {}]
  %s6 = inlined_call_operand.vmem [shape: f32[32,1], index: 6, kind: input, shape index: {}]
  %s7 = inlined_call_operand.vmem [shape: bf16[64,32], index: 7, kind: input, shape index: {}]
  %s8 = inlined_call_operand.vmem [shape: f32[64,1], index: 8, kind: input, shape index: {}]
  %s9 = inlined_call_operand.vmem [shape: f32[4], index: 9, kind: input, shape index: {}]
  %s10 = inlined_call_operand.hbm [shape: f32[2,64,256], index: 10, kind: output, shape index: {}]
  %s11 = sld [smem:[#allocation0]]
  $region81: #{tpu_custom_call.1} parent=0
    _
  %s13 = ssub.s32 1, %s11
  %s14 = scalar_select 0, %s13, %s11
  $region1: #{tpu_custom_call.1} parent=0
    #allocation2 [shape = 'u8[16384]{0}', space=vmem, size = 0x4000, scoped, tag = 'input window, operand 1']
    #allocation3 [shape = 's32[2]{0}', space=sflag, size = 0x8, scoped, tag = 'scoped memory for tpu_custom_call.1']
    #allocation4 [shape = 's32[2]{0}', space=sflag, size = 0x8, scoped, tag = 'scoped memory for tpu_custom_call.1']
    #allocation5 [shape = 's32[2]{0}', space=sflag, size = 0x8, scoped, tag = 'scoped memory for tpu_custom_call.1']
    #allocation6 [shape = 'u8[512]{0}', space=smem, size = 0x200, scoped, tag = 'input window, operand 9, single buffered']
    #allocation7 [shape = 'u8[65536]{0}', space=vmem, size = 0x10000, scoped, tag = 'output window, operand 0']
    %15 = vsyncpa [#allocation3], 0
    %s16 = scalar_lea.sflag [#allocation3], 1
    %17 = vsyncpa %s16, 0
    %18 = vsyncpa [#allocation5], 0
    %19 = vsyncpa [#allocation4], 0
    %s20 = scalar_lea.sflag [#allocation4], 1
    %21 = vsyncpa %s20, 0
    loop: start=0, step=1, limit=6
    $region2: #{tpu_custom_call.1} parent=1 // loop_pre_header
      _
    $region3: #{tpu_custom_call.1} parent=1 // loop_header
      %s23 = sphi 0, %s27
      %p24 = scmp.ge.s32.totalorder %s23, 6
      %s30 = sphi 0, %s42
      %s31 = sphi 0, %s38
      %s32 = sphi 0, %s30
      %s33 = sphi 0, %s31
      %s34 = sphi 0, %s32
      %s35 = sphi 0, %s33
      %s47 = sphi 0, %s49
      %s50 = sphi 0, %s47
      %s51 = sphi 0, %s50
      %s67 = sphi 0, %s51
      %s75 = sphi 0, %s77
      %s78 = sphi 0, %s75
      %s79 = sphi 0, %s78
      %s95 = sphi 0, %s79
      %s101 = sphi 0, %s103
      %s104 = sphi 0, %s101
      %s105 = sphi 0, %s104
      %s121 = sphi 0, %s105
      %s125 = sphi 0, %s125
      %s127 = sphi 0, %s125
      %s128 = sphi 0, %s127
      %s142 = sphi 0, %s128
      %s146 = sphi 0, %s146
      %s148 = sphi 0, %s146
      %s149 = sphi 0, %s148
      %s163 = sphi 0, %s149
      %s167 = sphi 0, %s167
      %s169 = sphi 0, %s167
      %s170 = sphi 0, %s169
      %s184 = sphi 0, %s170
      %s188 = sphi 0, %s188
      %s190 = sphi 0, %s188
      %s191 = sphi 0, %s190
      %s205 = sphi 0, %s191
      %s209 = sphi 0, %s209
      %s211 = sphi 0, %s209
      %s212 = sphi 0, %s211
      %s226 = sphi 0, %s212
      %s230 = sphi 0, %s230
      %s232 = sphi 0, %s230
      %s233 = sphi 0, %s232
      %s247 = sphi 0, %s233
      %s251 = sphi 0, %s251
      %s253 = sphi 0, %s251
      %s254 = sphi 0, %s253
      %s268 = sphi 0, %s254
      %s276 = sphi 0, %s278
      %s279 = sphi 0, %s276
      %s280 = sphi 0, %s279
      %s296 = sphi 0, %s280
    $region4: #{tpu_custom_call.1} parent=1 // loop_header_branch
      %26 = sbr.rel (%p24) target = $region8
    $region5: #{tpu_custom_call.1} parent=1 // loop_body
      %s28 = ssub.s32 %s23, 1
      %s29 = ssub.s32 %s23, 2
      %s36 = sadd.s32 1, %s31
      %p37 = scmp.ge.s32.totalorder %s36, 2
      %s38 = scalar_select %p37, 0, %s36
      %s39 = sadd.s32 1, %s30
      %s40 = scalar_select %p37, %s39, %s30
      %p41 = scmp.ge.s32.totalorder %s40, 2
      %s42 = scalar_select %p41, 0, %s40
      %s43 = ssub.s32 %s30, %s42
      %s44 = ssub.s32 %s31, %s38
      %s45 = sor.u32 %s43, %s44
      %p46 = scmp.eq.s32.totalorder %s45, 0
      %s48 = sadd.s32 %s47, 1
      %s49 = scalar_select %p46, %s47, %s48
      %p52 = pneg %p46
      %p53 = scmp.eq.s32.totalorder %s23, 3
      %p54 = por %p52, %p53
      %p55 = scmp.ne.s32.totalorder %s47, %s50
      %p56 = scmp.eq.s32.totalorder %s23, 0
      %p57 = por %p55, %p56
      %p58 = scmp.ne.s32.totalorder %s47, %s50
      %p59 = scmp.eq.s32.totalorder %s28, 3
      %p60 = por %p58, %p59
      %p61 = scmp.ne.s32.totalorder %s50, %s51
      %p62 = scmp.eq.s32.totalorder %s28, 0
      %p63 = por %p61, %p62
      %p64 = scmp.ne.s32.totalorder %s50, %s51
      %p65 = scmp.eq.s32.totalorder %s29, 3
      %p66 = por %p64, %p65
      %p68 = scmp.ne.s32.totalorder %s51, %s67
      %p69 = scmp.eq.s32.totalorder %s29, 0
      %p70 = por %p68, %p69
      %s71 = ssub.s32 %s30, %s42
      %s72 = ssub.s32 %s31, %s38
      %s73 = sor.u32 %s71, %s72
      %p74 = scmp.eq.s32.totalorder %s73, 0
      %s76 = sadd.s32 %s75, 1
      %s77 = scalar_select %p74, %s75, %s76
      %p80 = pneg %p74
      %p81 = scmp.eq.s32.totalorder %s23, 3
      %p82 = por %p80, %p81
      %p83 = scmp.ne.s32.totalorder %s75, %s78
      %p84 = scmp.eq.s32.totalorder %s23, 0
      %p85 = por %p83, %p84
      %p86 = scmp.ne.s32.totalorder %s75, %s78
      %p87 = scmp.eq.s32.totalorder %s28, 3
      %p88 = por %p86, %p87
      %p89 = scmp.ne.s32.totalorder %s78, %s79
      %p90 = scmp.eq.s32.totalorder %s28, 0
      %p91 = por %p89, %p90
      %p92 = scmp.ne.s32.totalorder %s78, %s79
      %p93 = scmp.eq.s32.totalorder %s29, 3
      %p94 = por %p92, %p93
      %p96 = scmp.ne.s32.totalorder %s79, %s95
      %p97 = scmp.eq.s32.totalorder %s29, 0
      %p98 = por %p96, %p97
      %s99 = ssub.s32 %s31, %s38
      %p100 = scmp.eq.s32.totalorder %s99, 0
      %s102 = sadd.s32 %s101, 1
      %s103 = scalar_select %p100, %s101, %s102
      %p106 = pneg %p100
      %p107 = scmp.eq.s32.totalorder %s23, 3
      %p108 = por %p106, %p107
      %p109 = scmp.ne.s32.totalorder %s101, %s104
      %p110 = scmp.eq.s32.totalorder %s23, 0
      %p111 = por %p109, %p110
      %p112 = scmp.ne.s32.totalorder %s101, %s104
      %p113 = scmp.eq.s32.totalorder %s28, 3
      %p114 = por %p112, %p113
      %p115 = scmp.ne.s32.totalorder %s104, %s105
      %p116 = scmp.eq.s32.totalorder %s28, 0
      %p117 = por %p115, %p116
      %p118 = scmp.ne.s32.totalorder %s104, %s105
      %p119 = scmp.eq.s32.totalorder %s29, 3
      %p120 = por %p118, %p119
      %p122 = scmp.ne.s32.totalorder %s105, %s121
      %p123 = scmp.eq.s32.totalorder %s29, 0
      %p124 = por %p122, %p123
      %s126 = sadd.s32 %s125, 1
      %p129 = scmp.eq.s32.totalorder %s23, 3
      %p130 = scmp.ne.s32.totalorder %s125, %s127
      %p131 = scmp.eq.s32.totalorder %s23, 0
      %p132 = por %p130, %p131
      %p133 = scmp.ne.s32.totalorder %s125, %s127
      %p134 = scmp.eq.s32.totalorder %s28, 3
      %p135 = por %p133, %p134
      %p136 = scmp.ne.s32.totalorder %s127, %s128
      %p137 = scmp.eq.s32.totalorder %s28, 0
      %p138 = por %p136, %p137
      %p139 = scmp.ne.s32.totalorder %s127, %s128
      %p140 = scmp.eq.s32.totalorder %s29, 3
      %p141 = por %p139, %p140
      %p143 = scmp.ne.s32.totalorder %s128, %s142
      %p144 = scmp.eq.s32.totalorder %s29, 0
      %p145 = por %p143, %p144
      %s147 = sadd.s32 %s146, 1
      %p150 = scmp.eq.s32.totalorder %s23, 3
      %p151 = scmp.ne.s32.totalorder %s146, %s148
      %p152 = scmp.eq.s32.totalorder %s23, 0
      %p153 = por %p151, %p152
      %p154 = scmp.ne.s32.totalorder %s146, %s148
      %p155 = scmp.eq.s32.totalorder %s28, 3
      %p156 = por %p154, %p155
      %p157 = scmp.ne.s32.totalorder %s148, %s149
      %p158 = scmp.eq.s32.totalorder %s28, 0
      %p159 = por %p157, %p158
      %p160 = scmp.ne.s32.totalorder %s148, %s149
      %p161 = scmp.eq.s32.totalorder %s29, 3
      %p162 = por %p160, %p161
      %p164 = scmp.ne.s32.totalorder %s149, %s163
      %p165 = scmp.eq.s32.totalorder %s29, 0
      %p166 = por %p164, %p165
      %s168 = sadd.s32 %s167, 1
      %p171 = scmp.eq.s32.totalorder %s23, 3
      %p172 = scmp.ne.s32.totalorder %s167, %s169
      %p173 = scmp.eq.s32.totalorder %s23, 0
      %p174 = por %p172, %p173
      %p175 = scmp.ne.s32.totalorder %s167, %s169
      %p176 = scmp.eq.s32.totalorder %s28, 3
      %p177 = por %p175, %p176
      %p178 = scmp.ne.s32.totalorder %s169, %s170
      %p179 = scmp.eq.s32.totalorder %s28, 0
      %p180 = por %p178, %p179
      %p181 = scmp.ne.s32.totalorder %s169, %s170
      %p182 = scmp.eq.s32.totalorder %s29, 3
      %p183 = por %p181, %p182
      %p185 = scmp.ne.s32.totalorder %s170, %s184
      %p186 = scmp.eq.s32.totalorder %s29, 0
      %p187 = por %p185, %p186
      %s189 = sadd.s32 %s188, 1
      %p192 = scmp.eq.s32.totalorder %s23, 3
      %p193 = scmp.ne.s32.totalorder %s188, %s190
      %p194 = scmp.eq.s32.totalorder %s23, 0
      %p195 = por %p193, %p194
      %p196 = scmp.ne.s32.totalorder %s188, %s190
      %p197 = scmp.eq.s32.totalorder %s28, 3
      %p198 = por %p196, %p197
      %p199 = scmp.ne.s32.totalorder %s190, %s191
      %p200 = scmp.eq.s32.totalorder %s28, 0
      %p201 = por %p199, %p200
      %p202 = scmp.ne.s32.totalorder %s190, %s191
      %p203 = scmp.eq.s32.totalorder %s29, 3
      %p204 = por %p202, %p203
      %p206 = scmp.ne.s32.totalorder %s191, %s205
      %p207 = scmp.eq.s32.totalorder %s29, 0
      %p208 = por %p206, %p207
      %s210 = sadd.s32 %s209, 1
      %p213 = scmp.eq.s32.totalorder %s23, 3
      %p214 = scmp.ne.s32.totalorder %s209, %s211
      %p215 = scmp.eq.s32.totalorder %s23, 0
      %p216 = por %p214, %p215
      %p217 = scmp.ne.s32.totalorder %s209, %s211
      %p218 = scmp.eq.s32.totalorder %s28, 3
      %p219 = por %p217, %p218
      %p220 = scmp.ne.s32.totalorder %s211, %s212
      %p221 = scmp.eq.s32.totalorder %s28, 0
      %p222 = por %p220, %p221
      %p223 = scmp.ne.s32.totalorder %s211, %s212
      %p224 = scmp.eq.s32.totalorder %s29, 3
      %p225 = por %p223, %p224
      %p227 = scmp.ne.s32.totalorder %s212, %s226
      %p228 = scmp.eq.s32.totalorder %s29, 0
      %p229 = por %p227, %p228
      %s231 = sadd.s32 %s230, 1
      %p234 = scmp.eq.s32.totalorder %s23, 3
      %p235 = scmp.ne.s32.totalorder %s230, %s232
      %p236 = scmp.eq.s32.totalorder %s23, 0
      %p237 = por %p235, %p236
      %p238 = scmp.ne.s32.totalorder %s230, %s232
      %p239 = scmp.eq.s32.totalorder %s28, 3
      %p240 = por %p238, %p239
      %p241 = scmp.ne.s32.totalorder %s232, %s233
      %p242 = scmp.eq.s32.totalorder %s28, 0
      %p243 = por %p241, %p242
      %p244 = scmp.ne.s32.totalorder %s232, %s233
      %p245 = scmp.eq.s32.totalorder %s29, 3
      %p246 = por %p244, %p245
      %p248 = scmp.ne.s32.totalorder %s233, %s247
      %p249 = scmp.eq.s32.totalorder %s29, 0
      %p250 = por %p248, %p249
      %s252 = sadd.s32 %s251, 1
      %p255 = scmp.eq.s32.totalorder %s23, 3
      %p256 = scmp.ne.s32.totalorder %s251, %s253
      %p257 = scmp.eq.s32.totalorder %s23, 0
      %p258 = por %p256, %p257
      %p259 = scmp.ne.s32.totalorder %s251, %s253
      %p260 = scmp.eq.s32.totalorder %s28, 3
      %p261 = por %p259, %p260
      %p262 = scmp.ne.s32.totalorder %s253, %s254
      %p263 = scmp.eq.s32.totalorder %s28, 0
      %p264 = por %p262, %p263
      %p265 = scmp.ne.s32.totalorder %s253, %s254
      %p266 = scmp.eq.s32.totalorder %s29, 3
      %p267 = por %p265, %p266
      %p269 = scmp.ne.s32.totalorder %s254, %s268
      %p270 = scmp.eq.s32.totalorder %s29, 0
      %p271 = por %p269, %p270
      %s272 = ssub.s32 %s30, %s42
      %s273 = ssub.s32 %s31, %s38
      %s274 = sor.u32 %s272, %s273
      %p275 = scmp.eq.s32.totalorder %s274, 0
      %s277 = sadd.s32 %s276, 1
      %s278 = scalar_select %p275, %s276, %s277
      %p281 = pneg %p275
      %p282 = scmp.eq.s32.totalorder %s23, 3
      %p283 = por %p281, %p282
      %p284 = scmp.ne.s32.totalorder %s276, %s279
      %p285 = scmp.eq.s32.totalorder %s23, 0
      %p286 = por %p284, %p285
      %p287 = scmp.ne.s32.totalorder %s276, %s279
      %p288 = scmp.eq.s32.totalorder %s28, 3
      %p289 = por %p287, %p288
      %p290 = scmp.ne.s32.totalorder %s279, %s280
      %p291 = scmp.eq.s32.totalorder %s28, 0
      %p292 = por %p290, %p291
      %p293 = scmp.ne.s32.totalorder %s279, %s280
      %p294 = scmp.eq.s32.totalorder %s29, 3
      %p295 = por %p293, %p294
      %p297 = scmp.ne.s32.totalorder %s280, %s296
      %p298 = scmp.eq.s32.totalorder %s29, 0
      %p299 = por %p297, %p298
      %p300 = scmp.le.s32.totalorder 1, %s23
      %p301 = scmp.lt.s32.totalorder %s23, 5
      %p302 = pnand %p300, %p301
      %p303 = pneg %p302
      // Predicated region
      $region9: #{tpu_custom_call.1} parent=5 // pred_check
        _
      $region10: #{tpu_custom_call.1} parent=5 // pred_check_branch
        %305 = sbr.rel (%p302) target = $region12
      $region11: #{tpu_custom_call.1} parent=5 // pred_region
        %s306 = ssub.s32 %s23, 1
        // Predicated region
        $region13: #{tpu_custom_call.1} parent=11 // pred_check
          %p307 = pneg %p138
        $region14: #{tpu_custom_call.1} parent=11 // pred_check_branch
          %309 = sbr.rel (%p307) target = $region16
        $region15: #{tpu_custom_call.1} parent=11 // pred_region
          _
        $region16: #{tpu_custom_call.1} parent=11 // pred_fallthru
          _
        // Predicated region
        $region17: #{tpu_custom_call.1} parent=11 // pred_check
          %p310 = pneg %p159
        $region18: #{tpu_custom_call.1} parent=11 // pred_check_branch
          %312 = sbr.rel (%p310) target = $region20
        $region19: #{tpu_custom_call.1} parent=11 // pred_region
          _
        $region20: #{tpu_custom_call.1} parent=11 // pred_fallthru
          _
        // Predicated region
        $region21: #{tpu_custom_call.1} parent=11 // pred_check
          %p313 = pneg %p180
        $region22: #{tpu_custom_call.1} parent=11 // pred_check_branch
          %315 = sbr.rel (%p313) target = $region24
        $region23: #{tpu_custom_call.1} parent=11 // pred_region
          _
        $region24: #{tpu_custom_call.1} parent=11 // pred_fallthru
          _
        // Predicated region
        $region25: #{tpu_custom_call.1} parent=11 // pred_check
          %p316 = pneg %p201
        $region26: #{tpu_custom_call.1} parent=11 // pred_check_branch
          %318 = sbr.rel (%p316) target = $region28
        $region27: #{tpu_custom_call.1} parent=11 // pred_region
          _
        $region28: #{tpu_custom_call.1} parent=11 // pred_fallthru
          _
        // Predicated region
        $region29: #{tpu_custom_call.1} parent=11 // pred_check
          %p319 = pneg %p222
        $region30: #{tpu_custom_call.1} parent=11 // pred_check_branch
          %321 = sbr.rel (%p319) target = $region32
        $region31: #{tpu_custom_call.1} parent=11 // pred_region
          _
        $region32: #{tpu_custom_call.1} parent=11 // pred_fallthru
          _
        // Predicated region
        $region33: #{tpu_custom_call.1} parent=11 // pred_check
          %p322 = pneg %p243
        $region34: #{tpu_custom_call.1} parent=11 // pred_check_branch
          %324 = sbr.rel (%p322) target = $region36
        $region35: #{tpu_custom_call.1} parent=11 // pred_region
          _
        $region36: #{tpu_custom_call.1} parent=11 // pred_fallthru
          _
        // Predicated region
        $region37: #{tpu_custom_call.1} parent=11 // pred_check
          %p325 = pneg %p264
        $region38: #{tpu_custom_call.1} parent=11 // pred_check_branch
          %327 = sbr.rel (%p325) target = $region40
        $region39: #{tpu_custom_call.1} parent=11 // pred_region
          %s329 = ssub.s32 16, 16
          %330 = vsyncadd [#allocation5], %s329
          %s332 = sshll.u32 %s9, 4
          %s333 = int_to_ptr.vmem [resolvable:$true] %s332
          %335 = dma.vmem_to_smem %s333, 16, [#allocation6], [#allocation5]
        $region40: #{tpu_custom_call.1} parent=11 // pred_fallthru
          _
      $region12: #{tpu_custom_call.1} parent=5 // pred_fallthru
        _
      %p336 = scmp.lt.s32.totalorder %s23, 4
      // Predicated region
      $region41: #{tpu_custom_call.1} parent=5 // pred_check
        %p337 = pneg %p336
      $region42: #{tpu_custom_call.1} parent=5 // pred_check_branch
        %339 = sbr.rel (%p337) target = $region44
      $region43: #{tpu_custom_call.1} parent=5 // pred_region
        // Predicated region
        $region45: #{tpu_custom_call.1} parent=43 // pred_check
          %p340 = pneg %p57
        $region46: #{tpu_custom_call.1} parent=43 // pred_check_branch
          %342 = sbr.rel (%p340) target = $region48
        $region47: #{tpu_custom_call.1} parent=43 // pred_region
          %p343 = scmp.lt.s32.totalorder %s30, 1
          %s344 = scalar_select %p343, %s30, 1
          %p345 = scmp.lt.s32.totalorder %s31, 1
          %s346 = scalar_select %p345, %s31, 1
          %s347 = smul.addr %s346, 8
          %s348 = smul.addr %s344, 16
          %s349 = sadd.s32 %s347, %s348
          %s350 = smul.addr %s349, 4
          %s351 = scalar_lea.vmem %s0, %s350
        $region48: #{tpu_custom_call.1} parent=43 // pred_fallthru
          _
        // Predicated region
        $region49: #{tpu_custom_call.1} parent=43 // pred_check
          %p352 = pneg %p85
        $region50: #{tpu_custom_call.1} parent=43 // pred_check_branch
          %354 = sbr.rel (%p352) target = $region52
        $region51: #{tpu_custom_call.1} parent=43 // pred_region
          %s355 = sand.u32 %s75, 1
          %s356 = scalar_lea.sflag [#allocation3], %s355
          %s357 = sand.u32 %s75, 1
          %s358 = smul.addr %s357, 16
          %s359 = scalar_lea.vmem [#allocation2], %s358
          %s361 = ssub.s32 256, 256
          %362 = vsyncadd %s356, %s361
          %s363 = smul.addr %s30, 4
          %s364 = sadd.s32 %s31, %s363
          %s365 = smul.addr %s364, 128
          %s366 = scalar_lea.hbm %s1, %s365
          %s367 = sshll.u32 %s359, 4
          %s368 = int_to_ptr.vmem [resolvable:$true] %s367
          %373 = dma.hbm_to_vmem [thread:$0]  %s366, 256, %s368, %s356, 256, 128, 8
        $region52: #{tpu_custom_call.1} parent=43 // pred_fallthru
          _
        // Predicated region
        $region53: #{tpu_custom_call.1} parent=43 // pred_check
          %p374 = pneg %p111
        $region54: #{tpu_custom_call.1} parent=43 // pred_check_branch
          %376 = sbr.rel (%p374) target = $region56
        $region55: #{tpu_custom_call.1} parent=43 // pred_region
          %p377 = scmp.lt.s32.totalorder %s31, 1
          %s378 = scalar_select %p377, %s31, 1
          %s379 = smul.addr %s378, 4
          %s380 = scalar_lea.vmem %s2, %s379
        $region56: #{tpu_custom_call.1} parent=43 // pred_fallthru
          _
      $region44: #{tpu_custom_call.1} parent=5 // pred_fallthru
        _
      %p381 = scmp.le.s32.totalorder 1, %s23
      %p382 = scmp.lt.s32.totalorder %s23, 5
      %p383 = pnand %p381, %p382
      %p384 = pneg %p383
      // Predicated region
      $region57: #{tpu_custom_call.1} parent=5 // pred_check
        _
      $region58: #{tpu_custom_call.1} parent=5 // pred_check_branch
        %386 = sbr.rel (%p383) target = $region60
      $region59: #{tpu_custom_call.1} parent=5 // pred_region
        %s387 = ssub.s32 %s23, 1
        %s388 = sand.u32 %s78, 1
        %s389 = scalar_lea.sflag [#allocation3], %s388
        %s390 = sand.u32 %s78, 1
        %s391 = smul.addr %s390, 16
        %s392 = scalar_lea.vmem [#allocation2], %s391
        // Predicated region
        $region61: #{tpu_custom_call.1} parent=59 // pred_check
          %p393 = pneg %p91
        $region62: #{tpu_custom_call.1} parent=59 // pred_check_branch
          %395 = sbr.rel (%p393) target = $region64
        $region63: #{tpu_custom_call.1} parent=59 // pred_region
          %396 = dma.done %s389, 256
        $region64: #{tpu_custom_call.1} parent=59 // pred_fallthru
          _
        // Predicated region
        $region65: #{tpu_custom_call.1} parent=59 // pred_check
          %p397 = pneg %p264
        $region66: #{tpu_custom_call.1} parent=59 // pred_check_branch
          %399 = sbr.rel (%p397) target = $region68
        $region67: #{tpu_custom_call.1} parent=59 // pred_region
          %400 = dma.done [#allocation5], 16
        $region68: #{tpu_custom_call.1} parent=59 // pred_fallthru
          _
        %401 = sfence
        %p402 = scmp.lt.s32.totalorder %s32, 1
        %s403 = scalar_select %p402, %s32, 1
        %p404 = scmp.lt.s32.totalorder %s33, 1
        %s405 = scalar_select %p404, %s33, 1
        %s406 = smul.addr %s405, 8
        %s407 = smul.addr %s403, 16
        %s408 = sadd.s32 %s406, %s407
        %s409 = smul.addr %s408, 4
        %s410 = scalar_lea.vmem %s0, %s409
        %p411 = pneg %p63
        %p412 = pneg %p60
        %s413 = sand.u32 %s78, 1
        %s414 = scalar_lea.sflag [#allocation3], %s413
        %s415 = sand.u32 %s78, 1
        %s416 = smul.addr %s415, 16
        %s417 = scalar_lea.vmem [#allocation2], %s416
        %p418 = pneg %p91
        %p419 = pneg %p88
        %p420 = scmp.lt.s32.totalorder %s33, 1
        %s421 = scalar_select %p420, %s33, 1
        %s422 = smul.addr %s421, 4
        %s423 = scalar_lea.vmem %s2, %s422
        %p424 = pneg %p117
        %p425 = pneg %p114
        %p426 = pneg %p138
        %p427 = pneg %p135
        %p428 = pneg %p159
        %p429 = pneg %p156
        %p430 = pneg %p180
        %p431 = pneg %p177
        %p432 = pneg %p201
        %p433 = pneg %p198
        %p434 = pneg %p222
        %p435 = pneg %p219
        %p436 = pneg %p243
        %p437 = pneg %p240
        %p438 = pneg %p264
        %p439 = pneg %p261
        %p440 = pneg %p292
        %p441 = pneg %p289
        %s442 = sand.u32 %s279, 1
        %s443 = scalar_lea.sflag [#allocation4], %s442
        %s444 = sand.u32 %s279, 1
        %s445 = smul.addr %s444, 64
        %s446 = scalar_lea.vmem [#allocation7], %s445
        %p447 = scmp.lt.s32.totalorder %s32, 1
        %s448 = scalar_select %p447, %s32, 1
        %p449 = scmp.lt.s32.totalorder %s33, 1
        %s450 = scalar_select %p449, %s33, 1
        %s451 = smul.addr %s450, 8
        %s452 = smul.addr %s448, 16
        %s453 = sadd.s32 %s451, %s452
        %s454 = smul.addr %s453, 4
        %s455 = scalar_lea.vmem %s0, %s454
        %p456 = scmp.lt.s32.totalorder %s33, 1
        %s457 = scalar_select %p456, %s33, 1
        %s458 = smul.addr %s457, 4
        %s459 = scalar_lea.vmem %s2, %s458
        %s461 = sld [smem:[#allocation6]]
        %s462 = sld [smem:[#allocation6 + $0x1]]
        %s463 = sld [smem:[#allocation6 + $0x2]]
        %s464 = sld [smem:[#allocation6 + $0x3]]
        %v465 = vld [vmem:[%s455] sm:$0xff]
        %v466 = vld [vmem:[%s455 + $0x8] sm:$0xff]
        %v467 = vld [vmem:[%s455 + $0x10] sm:$0xff]
        %v468 = vld [vmem:[%s455 + $0x18] sm:$0xff]
        %v469 = vld [vmem:[%s392] sm:$0xff]
        %v470 = vld [vmem:[%s392 + $0x8] sm:$0xff]
        %v471 = vld [vmem:[%s459] sm:$0x1]
        %v472 = vld [vmem:[%s459 + $0x1] sm:$0x1]
        %v473 = vld [vmem:[%s459 + $0x2] sm:$0x1]
        %v474 = vld [vmem:[%s3] sm:$0xf]
        %v475 = vld [vmem:[%s3 + $0x4] sm:$0xf]
        %v476 = vld [vmem:[%s3 + $0x8] sm:$0xf]
        %v477 = vld [vmem:[%s4] sm:$0xff]
        %v478 = vld [vmem:[%s4 + $0x8] sm:$0xff]
        %v479 = vld [vmem:[%s4 + $0x10] sm:$0xff]
        %481 = vset.pattern.permute.xlu0 0
        %482 = vperm.xlu0 %481, %v477
        %v483 = vpop.permute.xlu0 %482
        %486 = vset.pattern.permute.xlu0 0
        %487 = vperm.xlu0 %486, %v478
        %v488 = vpop.permute.xlu0 %487
        %491 = vset.pattern.permute.xlu0 0
        %492 = vperm.xlu0 %491, %v479
        %v493 = vpop.permute.xlu0 %492
        %v498 = vunpack.c.l.b16 %v474
        %v499 = vunpack.c.l.b16 %v475
        %v500 = vunpack.c.l.b16 %v476
        %v501 = vpack.c.b16 %v499, %v498
        %v502 = vpack.c.b16 %v500, %v500
        %v507 = vunpack.c.l.b16 %v465
        %v508 = vunpack.c.h.b16 %v465
        %v509 = vunpack.c.l.b16 %v466
        %v510 = vunpack.c.h.b16 %v466
        %v511 = vunpack.c.l.b16 %v467
        %v512 = vunpack.c.h.b16 %v467
        %v513 = vunpack.c.l.b16 %v468
        %v514 = vunpack.c.h.b16 %v468
        %v515 = vpack.c.b16 %v509, %v507
        %v516 = vpack.c.b16 %v510, %v508
        %v517 = vpack.c.b16 %v513, %v511
        %v518 = vpack.c.b16 %v514, %v512
        %vm523 = vcmask 261120
        %v525 = vsel %vm523, %v501, 0
        %v528 = vsel %vm523, %v502, 0
        %530 = vmatprep.subr.bf16.mxu0 0
        %531 = vmatpush1.bf16.msra.mxu0 0
        %532 = vmatprep.subr.bf16.mxu0 0
        %533 = vmatpush1.bf16.msra.mxu0 0
        %534 = vmatprep.subr.bf16.mxu0 0
        %535 = vmatpush1.bf16.msra.mxu0 0
        %536 = vmatprep.subr.bf16.mxu0 0
        %537 = vmatpush1.bf16.msra.mxu0 0
        %538 = vmatprep.subr.bf16.mxu0 0
        %539 = vmatpush1.bf16.msra.mxu0 0
        %540 = vmatprep.subr.bf16.mxu0 0
        %541 = vmatpush1.bf16.msra.mxu0 0
        %542 = vmatprep.subr.bf16.mxu0 %v518
        %543 = vmatpush1.bf16.msra.mxu0 %v517
        %544 = vmatprep.subr.bf16.mxu0 %v516
        %545 = vmatpush1.bf16.msra.mxu0 %v515
        %546 = vmatprep.subr.bf16.mxu0 0
        %547 = vmatpush2.bf16.msra.mxu0 0
        %548 = vmatprep.subr.bf16.mxu0 0
        %549 = vmatpush2.bf16.msra.mxu0 0
        %550 = vmatprep.subr.bf16.mxu0 0
        %551 = vmatpush2.bf16.msra.mxu0 0
        %552 = vmatprep.subr.bf16.mxu0 0
        %553 = vmatpush2.bf16.msra.mxu0 0
        %554 = vmatprep.subr.bf16.mxu0 0
        %555 = vmatpush2.bf16.msra.mxu0 0
        %556 = vmatprep.subr.bf16.mxu0 0
        %557 = vmatpush2.bf16.msra.mxu0 0
        %558 = vmatprep.subr.bf16.mxu0 0
        %559 = vmatpush2.bf16.msra.mxu0 0
        %560 = vmatprep.subr.bf16.mxu0 0
        %561 = vmatpush2.bf16.msra.mxu0 0
        %562 = vmatprep.mubr.bf16.mxu0 0
        %563 = vmatmul.mubr.bf16.gmra.mxu0 %v525
        %v564 = vpop.f32.mrf.mxu0
        %v565 = vadd.f32 %v483, %v564
        %v566 = vpop.f32.mrf.mxu0
        %v567 = vadd.f32 %v483, %v566
        %v568 = vpop.f32.mrf.mxu0
        %v569 = vadd.f32 %v488, %v568
        %v570 = vpop.f32.mrf.mxu0
        %571 = vmatprep.mubr.bf16.mxu0 0
        %572 = vmatmul.mubr.bf16.gmra.mxu0 %v528
        %v573 = vpop.f32.mrf.mxu0
        %v574 = vadd.f32 %v493, %v573
        %v575 = vpop.f32.mrf.mxu0
        %v576 = vpop.f32.mrf.mxu0
        %v577 = vpop.f32.mrf.mxu0
        %578 = vdwg.mxu0
        %vm579 = vcmp.ge.f32.partialorder %v565, 0.0
        %vm580 = vcmp.ge.f32.partialorder %v567, 0.0
        %v581 = vstv %s461
        %v582 = vmul.f32 %v581, %v565
        %v583 = vmul.f32 %v581, %v567
        %v584 = vsel %vm579, %v565, %v582
        %v585 = vsel %vm580, %v567, %v583
        %586 = vrot.lane.b32.xlu0 %v584, 127
        %v587 = vpop.permute.xlu0 %586
        %588 = vrot.lane.b32.xlu0 %v585, 127
        %v589 = vpop.permute.xlu0 %588
        %v590 = vlaneseq
        %v591 = vand.u32 %v590, 127
        %vm592 = vcmp.lt.s32.totalorder %v591, 127
        %v593 = vsel %vm592, %v587, %v589
        %v594 = vlaneseq
        %v595 = vshrl.u32 %v594, 7
        %v596 = vsub.s32 0, %v595
        %v597 = vrot.slane %v471, %v596
        %v598 = vmul.f32 %v593, %v597
        %599 = vrot.lane.b32.xlu0 %v584, 112
        %v600 = vpop.permute.xlu0 %599
        %601 = vrot.lane.b32.xlu0 %v585, 112
        %v602 = vpop.permute.xlu0 %601
        %vm603 = vcmp.lt.s32.totalorder %v591, 112
        %v604 = vsel %vm603, %v600, %v602
        %v605 = vlaneseq
        %v606 = vshrl.u32 %v605, 7
        %v607 = vsub.s32 0, %v606
        %v608 = vrot.slane %v472, %v607
        %v609 = vmul.f32 %v604, %v608
        %610 = vrot.lane.b32.xlu0 %v584, 111
        %v611 = vpop.permute.xlu0 %610
        %612 = vrot.lane.b32.xlu0 %v585, 111
        %v613 = vpop.permute.xlu0 %612
        %vm614 = vcmp.lt.s32.totalorder %v591, 111
        %v615 = vsel %vm614, %v611, %v613
        %v616 = vlaneseq
        %v617 = vshrl.u32 %v616, 7
        %v618 = vsub.s32 0, %v617
        %v619 = vrot.slane %v473, %v618
        %v620 = vmul.f32 %v615, %v619
        %v621 = vpack.c.bf16 %v598, %v584
        %v622 = vpack.c.bf16 %v620, %v609
        %v623 = vld [vmem:[%s5] sm:$0xf]
        %v624 = vld [vmem:[%s5 + $0x4] sm:$0xf]
        %v625 = vld [vmem:[%s5 + $0x8] sm:$0xf]
        %v626 = vld [vmem:[%s5 + $0xc] sm:$0xf]
        %v627 = vld [vmem:[%s6] sm:$0xff]
        %v628 = vld [vmem:[%s6 + $0x8] sm:$0xff]
        %v629 = vld [vmem:[%s6 + $0x10] sm:$0xff]
        %v630 = vld [vmem:[%s6 + $0x18] sm:$0xff]
        %632 = vset.pattern.permute.xlu0 0
        %633 = vperm.xlu0 %632, %v627
        %v634 = vpop.permute.xlu0 %633
        %637 = vset.pattern.permute.xlu0 0
        %638 = vperm.xlu0 %637, %v628
        %v639 = vpop.permute.xlu0 %638
        %642 = vset.pattern.permute.xlu0 0
        %643 = vperm.xlu0 %642, %v629
        %v644 = vpop.permute.xlu0 %643
        %647 = vset.pattern.permute.xlu0 0
        %648 = vperm.xlu0 %647, %v630
        %v649 = vpop.permute.xlu0 %648
        %v655 = vunpack.c.l.b16 %v623
        %v656 = vunpack.c.l.b16 %v624
        %v657 = vunpack.c.l.b16 %v625
        %v658 = vunpack.c.l.b16 %v626
        %v659 = vpack.c.b16 %v656, %v655
        %v660 = vpack.c.b16 %v658, %v657
        %v662 = vsel %vm523, %v659, 0
        %v665 = vsel %vm523, %v660, 0
        %667 = vmatprep.subr.bf16.mxu0 0
        %668 = vmatpush1.bf16.msra.mxu0 0
        %669 = vmatprep.subr.bf16.mxu0 0
        %670 = vmatpush1.bf16.msra.mxu0 0
        %671 = vmatprep.subr.bf16.mxu0 0
        %672 = vmatpush1.bf16.msra.mxu0 0
        %673 = vmatprep.subr.bf16.mxu0 0
        %674 = vmatpush1.bf16.msra.mxu0 0
        %675 = vmatprep.subr.bf16.mxu0 0
        %676 = vmatpush1.bf16.msra.mxu0 0
        %677 = vmatprep.subr.bf16.mxu0 0
        %678 = vmatpush1.bf16.msra.mxu0 0
        %679 = vmatprep.subr.bf16.mxu0 0
        %680 = vmatpush1.bf16.msra.mxu0 %v622
        %681 = vmatprep.subr.bf16.mxu0 0
        %682 = vmatpush1.bf16.msra.mxu0 %v621
        %683 = vmatprep.subr.bf16.mxu0 0
        %684 = vmatpush2.bf16.msra.mxu0 0
        %685 = vmatprep.subr.bf16.mxu0 0
        %686 = vmatpush2.bf16.msra.mxu0 0
        %687 = vmatprep.subr.bf16.mxu0 0
        %688 = vmatpush2.bf16.msra.mxu0 0
        %689 = vmatprep.subr.bf16.mxu0 0
        %690 = vmatpush2.bf16.msra.mxu0 0
        %691 = vmatprep.subr.bf16.mxu0 0
        %692 = vmatpush2.bf16.msra.mxu0 0
        %693 = vmatprep.subr.bf16.mxu0 0
        %694 = vmatpush2.bf16.msra.mxu0 0
        %695 = vmatprep.subr.bf16.mxu0 0
        %696 = vmatpush2.bf16.msra.mxu0 0
        %697 = vmatprep.subr.bf16.mxu0 0
        %698 = vmatpush2.bf16.msra.mxu0 0
        %699 = vmatprep.mubr.bf16.mxu0 0
        %700 = vmatmul.mubr.bf16.gmra.mxu0 %v662
        %v701 = vpop.f32.mrf.mxu0
        %v702 = vadd.f32 %v634, %v701
        %v703 = vpop.f32.mrf.mxu0
        %v704 = vpop.f32.mrf.mxu0
        %v705 = vadd.f32 %v639, %v704
        %v706 = vpop.f32.mrf.mxu0
        %707 = vmatprep.mubr.bf16.mxu0 0
        %708 = vmatmul.mubr.bf16.gmra.mxu0 %v665
        %v709 = vpop.f32.mrf.mxu0
        %v710 = vadd.f32 %v644, %v709
        %v711 = vpop.f32.mrf.mxu0
        %v712 = vpop.f32.mrf.mxu0
        %v713 = vadd.f32 %v649, %v712
        %v714 = vpop.f32.mrf.mxu0
        %715 = vdwg.mxu0
        %vm716 = vcmp.ge.f32.partialorder %v702, 0.0
        %vm717 = vcmp.ge.f32.partialorder %v705, 0.0
        %vm718 = vcmp.ge.f32.partialorder %v710, 0.0
        %vm719 = vcmp.ge.f32.partialorder %v713, 0.0
        %v720 = vstv %s462
        %v721 = vmul.f32 %v720, %v702
        %v722 = vmul.f32 %v720, %v705
        %v723 = vmul.f32 %v720, %v710
        %v724 = vmul.f32 %v720, %v713
        %v725 = vsel %vm716, %v702, %v721
        %v726 = vsel %vm717, %v705, %v722
        %v727 = vsel %vm718, %v710, %v723
        %v728 = vsel %vm719, %v713, %v724
        %v729 = vld [vmem:[%s7] sm:$0xf]
        %v730 = vld [vmem:[%s7 + $0x4] sm:$0xf]
        %v731 = vld [vmem:[%s7 + $0x8] sm:$0xf]
        %v732 = vld [vmem:[%s7 + $0xc] sm:$0xf]
        %v733 = vld [vmem:[%s7 + $0x10] sm:$0xf]
        %v734 = vld [vmem:[%s7 + $0x14] sm:$0xf]
        %v735 = vld [vmem:[%s7 + $0x18] sm:$0xf]
        %v736 = vld [vmem:[%s7 + $0x1c] sm:$0xf]
        %v737 = vpack.c.bf16 %v726, %v725
        %v738 = vpack.c.bf16 %v728, %v727
        %v739 = vld [vmem:[%s8] sm:$0xff]
        %v740 = vld [vmem:[%s8 + $0x8] sm:$0xff]
        %v741 = vld [vmem:[%s8 + $0x10] sm:$0xff]
        %v742 = vld [vmem:[%s8 + $0x18] sm:$0xff]
        %v743 = vld [vmem:[%s8 + $0x20] sm:$0xff]
        %v744 = vld [vmem:[%s8 + $0x28] sm:$0xff]
        %v745 = vld [vmem:[%s8 + $0x30] sm:$0xff]
        %v746 = vld [vmem:[%s8 + $0x38] sm:$0xff]
        %748 = vset.pattern.permute.xlu0 0
        %749 = vperm.xlu0 %748, %v739
        %v750 = vpop.permute.xlu0 %749
        %753 = vset.pattern.permute.xlu0 0
        %754 = vperm.xlu0 %753, %v740
        %v755 = vpop.permute.xlu0 %754
        %758 = vset.pattern.permute.xlu0 0
        %759 = vperm.xlu0 %758, %v741
        %v760 = vpop.permute.xlu0 %759
        %763 = vset.pattern.permute.xlu0 0
        %764 = vperm.xlu0 %763, %v742
        %v765 = vpop.permute.xlu0 %764
        %768 = vset.pattern.permute.xlu0 0
        %769 = vperm.xlu0 %768, %v743
        %v770 = vpop.permute.xlu0 %769
        %773 = vset.pattern.permute.xlu0 0
        %774 = vperm.xlu0 %773, %v744
        %v775 = vpop.permute.xlu0 %774
        %778 = vset.pattern.permute.xlu0 0
        %779 = vperm.xlu0 %778, %v745
        %v780 = vpop.permute.xlu0 %779
        %783 = vset.pattern.permute.xlu0 0
        %784 = vperm.xlu0 %783, %v746
        %v785 = vpop.permute.xlu0 %784
        %v795 = vunpack.c.l.b16 %v729
        %v796 = vunpack.c.l.b16 %v730
        %v797 = vunpack.c.l.b16 %v731
        %v798 = vunpack.c.l.b16 %v732
        %v799 = vunpack.c.l.b16 %v733
        %v800 = vunpack.c.l.b16 %v734
        %v801 = vunpack.c.l.b16 %v735
        %v802 = vunpack.c.l.b16 %v736
        %v803 = vpack.c.b16 %v796, %v795
        %v804 = vpack.c.b16 %v798, %v797
        %v805 = vpack.c.b16 %v800, %v799
        %v806 = vpack.c.b16 %v802, %v801
        %v808 = vsel %vm523, %v803, 0
        %v811 = vsel %vm523, %v804, 0
        %v814 = vsel %vm523, %v805, 0
        %v817 = vsel %vm523, %v806, 0
        %819 = vmatprep.subr.bf16.mxu0 0
        %820 = vmatpush1.bf16.msra.mxu0 0
        %821 = vmatprep.subr.bf16.mxu0 0
        %822 = vmatpush1.bf16.msra.mxu0 0
        %823 = vmatprep.subr.bf16.mxu0 0
        %824 = vmatpush1.bf16.msra.mxu0 0
        %825 = vmatprep.subr.bf16.mxu0 0
        %826 = vmatpush1.bf16.msra.mxu0 0
        %827 = vmatprep.subr.bf16.mxu0 0
        %828 = vmatpush1.bf16.msra.mxu0 0
        %829 = vmatprep.subr.bf16.mxu0 0
        %830 = vmatpush1.bf16.msra.mxu0 0
        %831 = vmatprep.subr.bf16.mxu0 0
        %832 = vmatpush1.bf16.msra.mxu0 %v738
        %833 = vmatprep.subr.bf16.mxu0 0
        %834 = vmatpush1.bf16.msra.mxu0 %v737
        %835 = vmatprep.subr.bf16.mxu0 0
        %836 = vmatpush2.bf16.msra.mxu0 0
        %837 = vmatprep.subr.bf16.mxu0 0
        %838 = vmatpush2.bf16.msra.mxu0 0
        %839 = vmatprep.subr.bf16.mxu0 0
        %840 = vmatpush2.bf16.msra.mxu0 0
        %841 = vmatprep.subr.bf16.mxu0 0
        %842 = vmatpush2.bf16.msra.mxu0 0
        %843 = vmatprep.subr.bf16.mxu0 0
        %844 = vmatpush2.bf16.msra.mxu0 0
        %845 = vmatprep.subr.bf16.mxu0 0
        %846 = vmatpush2.bf16.msra.mxu0 0
        %847 = vmatprep.subr.bf16.mxu0 0
        %848 = vmatpush2.bf16.msra.mxu0 0
        %849 = vmatprep.subr.bf16.mxu0 0
        %850 = vmatpush2.bf16.msra.mxu0 0
        %851 = vmatprep.mubr.bf16.mxu0 0
        %852 = vmatmul.mubr.bf16.gmra.mxu0 %v808
        %v853 = vpop.f32.mrf.mxu0
        %v854 = vadd.f32 %v750, %v853
        %v855 = vpop.f32.mrf.mxu0
        %v856 = vpop.f32.mrf.mxu0
        %v857 = vadd.f32 %v755, %v856
        %v858 = vpop.f32.mrf.mxu0
        %859 = vmatprep.mubr.bf16.mxu0 0
        %860 = vmatmul.mubr.bf16.gmra.mxu0 %v811
        %v861 = vpop.f32.mrf.mxu0
        %v862 = vadd.f32 %v760, %v861
        %v863 = vpop.f32.mrf.mxu0
        %v864 = vpop.f32.mrf.mxu0
        %v865 = vadd.f32 %v765, %v864
        %v866 = vpop.f32.mrf.mxu0
        %867 = vmatprep.mubr.bf16.mxu0 0
        %868 = vmatmul.mubr.bf16.gmra.mxu0 %v814
        %v869 = vpop.f32.mrf.mxu0
        %v870 = vadd.f32 %v770, %v869
        %v871 = vpop.f32.mrf.mxu0
        %v872 = vpop.f32.mrf.mxu0
        %v873 = vadd.f32 %v775, %v872
        %v874 = vpop.f32.mrf.mxu0
        %875 = vmatprep.mubr.bf16.mxu0 0
        %876 = vmatmul.mubr.bf16.gmra.mxu0 %v817
        %v877 = vpop.f32.mrf.mxu0
        %v878 = vadd.f32 %v780, %v877
        %v879 = vpop.f32.mrf.mxu0
        %v880 = vpop.f32.mrf.mxu0
        %v881 = vadd.f32 %v785, %v880
        %v882 = vpop.f32.mrf.mxu0
        %883 = vdwg.mxu0
        %vm884 = vcmp.ge.f32.partialorder %v854, 0.0
        %vm885 = vcmp.ge.f32.partialorder %v857, 0.0
        %vm886 = vcmp.ge.f32.partialorder %v862, 0.0
        %vm887 = vcmp.ge.f32.partialorder %v865, 0.0
        %vm888 = vcmp.ge.f32.partialorder %v870, 0.0
        %vm889 = vcmp.ge.f32.partialorder %v873, 0.0
        %vm890 = vcmp.ge.f32.partialorder %v878, 0.0
        %vm891 = vcmp.ge.f32.partialorder %v881, 0.0
        %v892 = vstv %s463
        %v893 = vmul.f32 %v892, %v854
        %v894 = vmul.f32 %v892, %v857
        %v895 = vmul.f32 %v892, %v862
        %v896 = vmul.f32 %v892, %v865
        %v897 = vmul.f32 %v892, %v870
        %v898 = vmul.f32 %v892, %v873
        %v899 = vmul.f32 %v892, %v878
        %v900 = vmul.f32 %v892, %v881
        %v901 = vsel %vm884, %v854, %v893
        %v902 = vsel %vm885, %v857, %v894
        %v903 = vsel %vm886, %v862, %v895
        %v904 = vsel %vm887, %v865, %v896
        %v905 = vsel %vm888, %v870, %v897
        %v906 = vsel %vm889, %v873, %v898
        %v907 = vsel %vm890, %v878, %v899
        %v908 = vsel %vm891, %v881, %v900
        %vm909 = vcmp.eq.s32.totalorder %v469, 0
        %vm910 = vcmp.eq.s32.totalorder %v470, 0
        %v911 = vsel %vm909, %v569, 0.0
        %v912 = vsel %vm910, %v574, 0.0
        %v913 = vadd.f32 %v901, %v911
        %v914 = vadd.f32 %v902, %v912
        %vm915 = vcmp.ge.f32.partialorder %v913, 0.0
        %vm916 = vcmp.ge.f32.partialorder %v914, 0.0
        %v917 = vstv %s464
        %v918 = vmul.f32 %v917, %v913
        %v919 = vmul.f32 %v917, %v914
        %v920 = vsel %vm915, %v913, %v918
        %v921 = vsel %vm916, %v914, %v919
        %922 = vst [vmem:[%s446] sm:$0xff] %v920
        %923 = vst [vmem:[%s446 + $0x8] sm:$0xff] %v921
        %vm924 = vcmp.eq.s32.totalorder %v469, 1
        %vm925 = vcmp.eq.s32.totalorder %v470, 1
        %v926 = vsel %vm924, %v569, 0.0
        %v927 = vsel %vm925, %v574, 0.0
        %v928 = vadd.f32 %v903, %v926
        %v929 = vadd.f32 %v904, %v927
        %vm930 = vcmp.ge.f32.partialorder %v928, 0.0
        %vm931 = vcmp.ge.f32.partialorder %v929, 0.0
        %v932 = vmul.f32 %v917, %v928
        %v933 = vmul.f32 %v917, %v929
        %v934 = vsel %vm930, %v928, %v932
        %v935 = vsel %vm931, %v929, %v933
        %936 = vst [vmem:[%s446 + $0x10] sm:$0xff] %v934
        %937 = vst [vmem:[%s446 + $0x18] sm:$0xff] %v935
        %vm938 = vcmp.eq.s32.totalorder %v469, 2
        %vm939 = vcmp.eq.s32.totalorder %v470, 2
        %v940 = vsel %vm938, %v569, 0.0
        %v941 = vsel %vm939, %v574, 0.0
        %v942 = vadd.f32 %v905, %v940
        %v943 = vadd.f32 %v906, %v941
        %vm944 = vcmp.ge.f32.partialorder %v942, 0.0
        %vm945 = vcmp.ge.f32.partialorder %v943, 0.0
        %v946 = vmul.f32 %v917, %v942
        %v947 = vmul.f32 %v917, %v943
        %v948 = vsel %vm944, %v942, %v946
        %v949 = vsel %vm945, %v943, %v947
        %950 = vst [vmem:[%s446 + $0x20] sm:$0xff] %v948
        %951 = vst [vmem:[%s446 + $0x28] sm:$0xff] %v949
        %vm952 = vcmp.eq.s32.totalorder %v469, 3
        %vm953 = vcmp.eq.s32.totalorder %v470, 3
        %v954 = vsel %vm952, %v569, 0.0
        %v955 = vsel %vm953, %v574, 0.0
        %v956 = vadd.f32 %v907, %v954
        %v957 = vadd.f32 %v908, %v955
        %vm958 = vcmp.ge.f32.partialorder %v956, 0.0
        %vm959 = vcmp.ge.f32.partialorder %v957, 0.0
        %v960 = vmul.f32 %v917, %v956
        %v961 = vmul.f32 %v917, %v957
        %v962 = vsel %vm958, %v956, %v960
        %v963 = vsel %vm959, %v957, %v961
        %964 = vst [vmem:[%s446 + $0x30] sm:$0xff] %v962
        %965 = vst [vmem:[%s446 + $0x38] sm:$0xff] %v963
        %s966 = sand.u32 %s279, 1
        %s967 = scalar_lea.sflag [#allocation4], %s966
        %s968 = sand.u32 %s279, 1
        %s969 = smul.addr %s968, 64
        %s970 = scalar_lea.vmem [#allocation7], %s969
        // Predicated region
        $region69: #{tpu_custom_call.1} parent=59 // pred_check
          %p971 = pneg %p289
        $region70: #{tpu_custom_call.1} parent=59 // pred_check_branch
          %973 = sbr.rel (%p971) target = $region72
        $region71: #{tpu_custom_call.1} parent=59 // pred_region
          %s975 = ssub.s32 1024, 1024
          %976 = vsyncadd %s967, %s975
          %s977 = smul.addr %s32, 16
          %s978 = sadd.s32 %s33, %s977
          %s979 = smul.addr %s978, 128
          %s980 = scalar_lea.hbm %s10, %s979
          %s981 = sshll.u32 %s970, 4
          %s982 = int_to_ptr.vmem [resolvable:$true] %s981
          %987 = dma.vmem_to_hbm [thread:$0]  %s982, 1024, %s980, %s967, 128, 256, 8
        $region72: #{tpu_custom_call.1} parent=59 // pred_fallthru
          _
      $region60: #{tpu_custom_call.1} parent=5 // pred_fallthru
        _
      %p988 = scmp.le.s32.totalorder 2, %s23
      // Predicated region
      $region73: #{tpu_custom_call.1} parent=5 // pred_check
        %p989 = pneg %p988
      $region74: #{tpu_custom_call.1} parent=5 // pred_check_branch
        %991 = sbr.rel (%p989) target = $region76
      $region75: #{tpu_custom_call.1} parent=5 // pred_region
        %s992 = ssub.s32 %s23, 2
        // Predicated region
        $region77: #{tpu_custom_call.1} parent=75 // pred_check
          %p993 = pneg %p295
        $region78: #{tpu_custom_call.1} parent=75 // pred_check_branch
          %995 = sbr.rel (%p993) target = $region80
        $region79: #{tpu_custom_call.1} parent=75 // pred_region
          %s996 = sand.u32 %s280, 1
          %s997 = scalar_lea.sflag [#allocation4], %s996
          %s998 = sand.u32 %s280, 1
          %s999 = smul.addr %s998, 64
          %s1000 = scalar_lea.vmem [#allocation7], %s999
          %1001 = dma.done %s997, 1024
        $region80: #{tpu_custom_call.1} parent=75 // pred_fallthru
          _
      $region76: #{tpu_custom_call.1} parent=5 // pred_fallthru
        _
    $region6: #{tpu_custom_call.1} parent=1 // loop_footer
      %s27 = sadd.s32 1, %s23
    $region7: #{tpu_custom_call.1} parent=1 // loop_footer_branch
      %22 = sbr.rel target = $region3
    $region8: #{tpu_custom_call.1} parent=1 // loop_exit
      _
    %1002 = vsyncpa [#allocation3], 1
    %s1003 = scalar_lea.sflag [#allocation3], 1
    %1004 = vsyncpa %s1003, 1
    %1005 = vsyncpa [#allocation4], 1
    %s1006 = scalar_lea.sflag [#allocation4], 1
    %1007 = vsyncpa %s1006, 1
    %1008 = vsyncpa [#allocation5], 1
    %s1009 = scalar_lea.sflag [#allocation5], 1
    %1010 = vsyncpa %s1009, 1

</llo_original>
